<compile_context>
chip_gen: v6e
topology: v6e:2x2x1
jax: 0.10.0
libtpu: 0.0.40
codegen_flags: <defaults>
</compile_context>

<pallas_src>
import functools

import jax
import jax.numpy as jnp
from jax.experimental import pallas as pl
from jax.experimental.pallas import tpu as pltpu

LANE = 128
MAX_BLOCK_ROWS = 512   # 512 rows x 128 lanes x 4B = 256 KiB per block per input
NUM_SPLITS = 2         # leading "parallel" axis (2 TCs on v7x; cheap loop elsewhere)


def _round_up(x, m):
    return -(-x // m) * m


def _dice_bce_kernel(x_ref, t_ref, acc_ref, *, block_rows):
    # Grid = (core_split, row_block); row_block is the sequential axis.
    i = pl.program_id(1)

    @pl.when(i == 0)
    def _():
        acc_ref[...] = jnp.zeros_like(acc_ref)

    x = x_ref[...].astype(jnp.float32)   # (block_rows, LANE)
    t = t_ref[...].astype(jnp.float32)

    # sigmoid + BCE from logits, sharing a single exp(-|x|) (2 EUP ops + 1 div):
    #   sigmoid(x) = (x>=0 ? 1 : e) / (1+e),        e = exp(-|x|)
    #   softplus(+-x) = log1p(e) + relu(+-x)
    #   -log(sigmoid(x))   = softplus(-x)
    #   -log(1-sigmoid(x)) = softplus(x)
    # PyTorch's F.binary_cross_entropy clamps the log terms at -100, i.e.
    # clamp the softplus terms at 100.
    e = jnp.exp(-jnp.abs(x))
    denom_inv = 1.0 / (1.0 + e)
    p = jnp.where(x >= 0, 1.0, e) * denom_inv
    l1p = jnp.log1p(e)
    sp_pos = jnp.minimum(l1p + jnp.maximum(x, 0.0), 100.0)    # -log(1-p), clamped
    sp_neg = jnp.minimum(l1p + jnp.maximum(-x, 0.0), 100.0)   # -log(p),   clamped
    bce = t * sp_neg + (1.0 - t) * sp_pos

    # Fold (block_rows, 128) -> (8, 128) with pure VPU adds (no per-step XLU /
    # scalar round-trip); the cross-lane reduce happens once, outside the kernel.
    sub = block_rows // 8

    def fold(v):
        return jnp.sum(v.reshape(sub, 8, LANE), axis=0)

    acc_ref[0] += fold(p * t)   # intersection
    acc_ref[1] += fold(p)       # sum(p)
    acc_ref[2] += fold(t)       # sum(t)
    acc_ref[3] += fold(bce)     # sum(bce)


def dice_bce_loss(logits, targets, smooth=1.0):
    """Equivalent of DiceBCELoss.forward(inputs=logits, targets, smooth)."""
    # TODO(synk): targets that are exact 0/1 could be fed as bf16 to halve one
    # HBM stream; kept f32 to preserve semantics for soft labels.
    x = logits.reshape(-1).astype(jnp.float32)
    t = targets.reshape(-1).astype(jnp.float32)
    n = x.shape[0]

    rows = -(-n // LANE)
    rows_per_core = -(-rows // NUM_SPLITS)
    block_rows = min(MAX_BLOCK_ROWS, _round_up(rows_per_core, 8))
    rows_per_core = _round_up(rows_per_core, block_rows)
    total_elems = NUM_SPLITS * rows_per_core * LANE
    pad = total_elems - n
    if pad:
        # Pad logits with -100: sigmoid(-100) ~ 0 and the clamped BCE term is
        # ~exp(-100) ~ 0, so padding contributes (numerically) nothing.
        x = jnp.pad(x, (0, pad), constant_values=-100.0)
        t = jnp.pad(t, (0, pad), constant_values=0.0)

    x3 = x.reshape(NUM_SPLITS, rows_per_core, LANE)
    t3 = t.reshape(NUM_SPLITS, rows_per_core, LANE)
    inner = rows_per_core // block_rows

    kernel = functools.partial(_dice_bce_kernel, block_rows=block_rows)

    partial_sums = pl.pallas_call(
        kernel,
        out_shape=jax.ShapeDtypeStruct((NUM_SPLITS, 4, 8, LANE), jnp.float32),
        grid_spec=pltpu.PrefetchScalarGridSpec(
            num_scalar_prefetch=0,
            grid=(NUM_SPLITS, inner),
            in_specs=[
                pl.BlockSpec((None, block_rows, LANE), lambda c, i: (c, i, 0)),
                pl.BlockSpec((None, block_rows, LANE), lambda c, i: (c, i, 0)),
            ],
            out_specs=pl.BlockSpec((None, 4, 8, LANE), lambda c, i: (c, 0, 0, 0)),
        ),
        compiler_params=pltpu.CompilerParams(
            dimension_semantics=("parallel", "arbitrary"),
        ),
        cost_estimate=pl.CostEstimate(
            flops=16 * total_elems,
            transcendentals=2 * total_elems,
            bytes_accessed=8 * total_elems + NUM_SPLITS * 4 * 8 * LANE * 4,
        ),
    )(x3, t3)

    # Tiny epilogue in plain JAX: combine the per-core (4, 8, 128) partials.
    sums = jnp.sum(partial_sums, axis=(0, 2, 3))          # (4,)
    intersection, sum_p, sum_t, sum_bce = sums[0], sums[1], sums[2], sums[3]
    smooth = jnp.float32(smooth)
    dice_loss = 1.0 - (2.0 * intersection + smooth) / (sum_p + sum_t + smooth)
    bce_loss = sum_bce / jnp.float32(n)
    return dice_loss + bce_loss


def _reference(logits, targets, smooth=1.0):
    p = jax.nn.sigmoid(logits).reshape(-1)
    t = targets.reshape(-1)
    intersection = jnp.sum(p * t)
    dice = 1.0 - (2.0 * intersection + smooth) / (jnp.sum(p) + jnp.sum(t) + smooth)
    bce = jnp.mean(
        -(t * jnp.maximum(jnp.log(p), -100.0)
          + (1.0 - t) * jnp.maximum(jnp.log(1.0 - p), -100.0))
    )
    return dice + bce


if __name__ == "__main__":
    key = jax.random.PRNGKey(0)
    k1, k2 = jax.random.split(key)

    # NCHW, matching the PyTorch module's typical segmentation inputs.
    shape = (2, 4, 16, 16)
    logits = jax.random.normal(k1, shape, dtype=jnp.float32)
    targets = (jax.random.uniform(k2, shape) > 0.5).astype(jnp.float32)

    loss = dice_bce_loss(logits, targets, smooth=1.0)
    jax.block_until_ready(loss)

    ref = _reference(logits, targets, smooth=1.0)
    assert jnp.allclose(loss, ref, atol=1e-5, rtol=1e-5), (loss, ref)

    print("KERNEL_OK")
</pallas_src>

<mosaic_0001>
module attributes {stable_mosaic.version = 11 : i64} {
  func.func @_dice_bce_kernel(%arg0: i32, %arg1: i32, %arg2: memref<1x8x128xf32, #tpu.memory_space<vmem>>, %arg3: memref<1x8x128xf32, #tpu.memory_space<vmem>>, %arg4: memref<1x4x8x128xf32, #tpu.memory_space<vmem>>) attributes {dimension_semantics = [#tpu.dimension_semantics<parallel>, #tpu.dimension_semantics<arbitrary>], iteration_bounds = array<i64: 2, 1>, scalar_prefetch = 0 : i64, scratch_operands = 0 : i64, tpu.core_type = #tpu.core_type<tc>, window_params = [{transform_indices = @transform_0, window_bounds = array<i64: 1, 8, 128>}, {transform_indices = @transform_1, window_bounds = array<i64: 1, 8, 128>}, {transform_indices = @transform_2, window_bounds = array<i64: 1, 4, 8, 128>}]} {
    %c0_i32 = arith.constant 0 : i32
    %0 = arith.cmpi eq, %arg1, %c0_i32 : i32
    %1 = arith.extui %0 : i1 to i32
    %c0_i32_0 = arith.constant 0 : i32
    %2 = arith.cmpi ne, %1, %c0_i32_0 : i32
    scf.if %2 {
      %cst_49 = arith.constant 0.000000e+00 : f32
      %71 = vector.broadcast %cst_49 : f32 to vector<4x8x128xf32>
      %c0_50 = arith.constant 0 : index
      %c0_51 = arith.constant 0 : index
      %c0_52 = arith.constant 0 : index
      %c0_53 = arith.constant 0 : index
      %72 = vector.load %arg4[%c0_50, %c0_51, %c0_52, %c0_53] : memref<1x4x8x128xf32, #tpu.memory_space<vmem>>, vector<1x4x8x128xf32>
      %73 = vector.shape_cast %72 : vector<1x4x8x128xf32> to vector<4x8x128xf32>
      %74 = vector.shape_cast %71 : vector<4x8x128xf32> to vector<1x4x8x128xf32>
      tpu.vector_store %arg4[%c0_50, %c0_51, %c0_52, %c0_53], %74 {strides = array<i32>} : memref<1x4x8x128xf32, #tpu.memory_space<vmem>>, vector<1x4x8x128xf32>,
    } else {
    }
    %c0 = arith.constant 0 : index
    %c0_1 = arith.constant 0 : index
    %c0_2 = arith.constant 0 : index
    %3 = vector.load %arg2[%c0, %c0_1, %c0_2] : memref<1x8x128xf32, #tpu.memory_space<vmem>>, vector<1x8x128xf32>
    %4 = vector.shape_cast %3 : vector<1x8x128xf32> to vector<8x128xf32>
    %c0_3 = arith.constant 0 : index
    %c0_4 = arith.constant 0 : index
    %c0_5 = arith.constant 0 : index
    %5 = vector.load %arg3[%c0_3, %c0_4, %c0_5] : memref<1x8x128xf32, #tpu.memory_space<vmem>>, vector<1x8x128xf32>
    %6 = vector.shape_cast %5 : vector<1x8x128xf32> to vector<8x128xf32>
    %7 = math.absf %4 : vector<8x128xf32>
    %cst = arith.constant 0.000000e+00 : f32
    %8 = vector.broadcast %cst : f32 to vector<8x128xf32>
    %9 = arith.subf %8, %7 : vector<8x128xf32>
    %10 = math.exp %9 : vector<8x128xf32>
    %cst_6 = arith.constant 1.000000e+00 : f32
    %11 = vector.broadcast %cst_6 : f32 to vector<8x128xf32>
    %12 = arith.addf %11, %10 : vector<8x128xf32>
    %cst_7 = arith.constant 1.000000e+00 : f32
    %13 = vector.broadcast %cst_7 : f32 to vector<8x128xf32>
    %14 = arith.divf %13, %12 : vector<8x128xf32>
    %cst_8 = arith.constant 0.000000e+00 : f32
    %15 = vector.broadcast %cst_8 : f32 to vector<8x128xf32>
    %16 = arith.cmpf oge, %4, %15 : vector<8x128xf32>
    %cst_9 = arith.constant 1.000000e+00 : f32
    %17 = vector.broadcast %cst_9 : f32 to vector<8x128xf32>
    %18 = arith.select %16, %17, %10 : vector<8x128xi1>, vector<8x128xf32>
    %19 = arith.mulf %18, %14 : vector<8x128xf32>
    %20 = math.log1p %10 : vector<8x128xf32>
    %cst_10 = arith.constant 0.000000e+00 : f32
    %21 = vector.broadcast %cst_10 : f32 to vector<8x128xf32>
    %22 = arith.maximumf %4, %21 : vector<8x128xf32>
    %23 = arith.addf %20, %22 : vector<8x128xf32>
    %cst_11 = arith.constant 1.000000e+02 : f32
    %24 = vector.broadcast %cst_11 : f32 to vector<8x128xf32>
    %25 = arith.minimumf %23, %24 : vector<8x128xf32>
    %cst_12 = arith.constant 0.000000e+00 : f32
    %26 = vector.broadcast %cst_12 : f32 to vector<8x128xf32>
    %27 = arith.subf %26, %4 : vector<8x128xf32>
    %cst_13 = arith.constant 0.000000e+00 : f32
    %28 = vector.broadcast %cst_13 : f32 to vector<8x128xf32>
    %29 = arith.maximumf %27, %28 : vector<8x128xf32>
    %30 = arith.addf %20, %29 : vector<8x128xf32>
    %cst_14 = arith.constant 1.000000e+02 : f32
    %31 = vector.broadcast %cst_14 : f32 to vector<8x128xf32>
    %32 = arith.minimumf %30, %31 : vector<8x128xf32>
    %33 = arith.mulf %6, %32 : vector<8x128xf32>
    %cst_15 = arith.constant 1.000000e+00 : f32
    %34 = vector.broadcast %cst_15 : f32 to vector<8x128xf32>
    %35 = arith.subf %34, %6 : vector<8x128xf32>
    %36 = arith.mulf %35, %25 : vector<8x128xf32>
    %37 = arith.addf %33, %36 : vector<8x128xf32>
    %c0_16 = arith.constant 0 : index
    %c0_17 = arith.constant 0 : index
    %c0_18 = arith.constant 0 : index
    %c0_19 = arith.constant 0 : index
    %38 = vector.load %arg4[%c0_16, %c0_17, %c0_18, %c0_19] : memref<1x4x8x128xf32, #tpu.memory_space<vmem>>, vector<1x1x8x128xf32>
    %39 = vector.shape_cast %38 : vector<1x1x8x128xf32> to vector<8x128xf32>
    %40 = arith.mulf %19, %6 : vector<8x128xf32>
    %41 = vector.shape_cast %40 : vector<8x128xf32> to vector<1x8x128xf32>
    %cst_20 = arith.constant dense<0.000000e+00> : vector<8x128xf32>
    %42 = vector.multi_reduction <add>, %41, %cst_20 [0] : vector<1x8x128xf32> to vector<8x128xf32>
    %43 = arith.addf %39, %42 : vector<8x128xf32>
    %c0_21 = arith.constant 0 : index
    %c0_22 = arith.constant 0 : index
    %c0_23 = arith.constant 0 : index
    %c0_24 = arith.constant 0 : index
    %44 = vector.load %arg4[%c0_21, %c0_22, %c0_23, %c0_24] : memref<1x4x8x128xf32, #tpu.memory_space<vmem>>, vector<1x1x8x128xf32>
    %45 = vector.shape_cast %44 : vector<1x1x8x128xf32> to vector<8x128xf32>
    %46 = vector.shape_cast %43 : vector<8x128xf32> to vector<1x1x8x128xf32>
    tpu.vector_store %arg4[%c0_21, %c0_22, %c0_23, %c0_24], %46 {strides = array<i32>} : memref<1x4x8x128xf32, #tpu.memory_space<vmem>>, vector<1x1x8x128xf32>,
    %c0_25 = arith.constant 0 : index
    %c1 = arith.constant 1 : index
    %c0_26 = arith.constant 0 : index
    %c0_27 = arith.constant 0 : index
    %47 = vector.load %arg4[%c0_25, %c1, %c0_26, %c0_27] : memref<1x4x8x128xf32, #tpu.memory_space<vmem>>, vector<1x1x8x128xf32>
    %48 = vector.shape_cast %47 : vector<1x1x8x128xf32> to vector<8x128xf32>
    %49 = vector.shape_cast %19 : vector<8x128xf32> to vector<1x8x128xf32>
    %cst_28 = arith.constant dense<0.000000e+00> : vector<8x128xf32>
    %50 = vector.multi_reduction <add>, %49, %cst_28 [0] : vector<1x8x128xf32> to vector<8x128xf32>
    %51 = arith.addf %48, %50 : vector<8x128xf32>
    %c0_29 = arith.constant 0 : index
    %c1_30 = arith.constant 1 : index
    %c0_31 = arith.constant 0 : index
    %c0_32 = arith.constant 0 : index
    %52 = vector.load %arg4[%c0_29, %c1_30, %c0_31, %c0_32] : memref<1x4x8x128xf32, #tpu.memory_space<vmem>>, vector<1x1x8x128xf32>
    %53 = vector.shape_cast %52 : vector<1x1x8x128xf32> to vector<8x128xf32>
    %54 = vector.shape_cast %51 : vector<8x128xf32> to vector<1x1x8x128xf32>
    tpu.vector_store %arg4[%c0_29, %c1_30, %c0_31, %c0_32], %54 {strides = array<i32>} : memref<1x4x8x128xf32, #tpu.memory_space<vmem>>, vector<1x1x8x128xf32>,
    %c0_33 = arith.constant 0 : index
    %c2 = arith.constant 2 : index
    %c0_34 = arith.constant 0 : index
    %c0_35 = arith.constant 0 : index
    %55 = vector.load %arg4[%c0_33, %c2, %c0_34, %c0_35] : memref<1x4x8x128xf32, #tpu.memory_space<vmem>>, vector<1x1x8x128xf32>
    %56 = vector.shape_cast %55 : vector<1x1x8x128xf32> to vector<8x128xf32>
    %57 = vector.shape_cast %6 : vector<8x128xf32> to vector<1x8x128xf32>
    %cst_36 = arith.constant dense<0.000000e+00> : vector<8x128xf32>
    %58 = vector.multi_reduction <add>, %57, %cst_36 [0] : vector<1x8x128xf32> to vector<8x128xf32>
    %59 = arith.addf %56, %58 : vector<8x128xf32>
    %c0_37 = arith.constant 0 : index
    %c2_38 = arith.constant 2 : index
    %c0_39 = arith.constant 0 : index
    %c0_40 = arith.constant 0 : index
    %60 = vector.load %arg4[%c0_37, %c2_38, %c0_39, %c0_40] : memref<1x4x8x128xf32, #tpu.memory_space<vmem>>, vector<1x1x8x128xf32>
    %61 = vector.shape_cast %60 : vector<1x1x8x128xf32> to vector<8x128xf32>
    %62 = vector.shape_cast %59 : vector<8x128xf32> to vector<1x1x8x128xf32>
    tpu.vector_store %arg4[%c0_37, %c2_38, %c0_39, %c0_40], %62 {strides = array<i32>} : memref<1x4x8x128xf32, #tpu.memory_space<vmem>>, vector<1x1x8x128xf32>,
    %c0_41 = arith.constant 0 : index
    %c3 = arith.constant 3 : index
    %c0_42 = arith.constant 0 : index
    %c0_43 = arith.constant 0 : index
    %63 = vector.load %arg4[%c0_41, %c3, %c0_42, %c0_43] : memref<1x4x8x128xf32, #tpu.memory_space<vmem>>, vector<1x1x8x128xf32>
    %64 = vector.shape_cast %63 : vector<1x1x8x128xf32> to vector<8x128xf32>
    %65 = vector.shape_cast %37 : vector<8x128xf32> to vector<1x8x128xf32>
    %cst_44 = arith.constant dense<0.000000e+00> : vector<8x128xf32>
    %66 = vector.multi_reduction <add>, %65, %cst_44 [0] : vector<1x8x128xf32> to vector<8x128xf32>
    %67 = arith.addf %64, %66 : vector<8x128xf32>
    %c0_45 = arith.constant 0 : index
    %c3_46 = arith.constant 3 : index
    %c0_47 = arith.constant 0 : index
    %c0_48 = arith.constant 0 : index
    %68 = vector.load %arg4[%c0_45, %c3_46, %c0_47, %c0_48] : memref<1x4x8x128xf32, #tpu.memory_space<vmem>>, vector<1x1x8x128xf32>
    %69 = vector.shape_cast %68 : vector<1x1x8x128xf32> to vector<8x128xf32>
    %70 = vector.shape_cast %67 : vector<8x128xf32> to vector<1x1x8x128xf32>
    tpu.vector_store %arg4[%c0_45, %c3_46, %c0_47, %c0_48], %70 {strides = array<i32>} : memref<1x4x8x128xf32, #tpu.memory_space<vmem>>, vector<1x1x8x128xf32>,
    return
  }
  func.func @transform_0(%arg0: i32, %arg1: i32) -> (i32, i32, i32) {
    %c0_i32 = arith.constant 0 : i32
    %c0_i32_0 = arith.constant 0 : i32
    return %arg0, %arg1, %c0_i32 : i32, i32, i32
  }
  func.func @transform_1(%arg0: i32, %arg1: i32) -> (i32, i32, i32) {
    %c0_i32 = arith.constant 0 : i32
    %c0_i32_0 = arith.constant 0 : i32
    return %arg0, %arg1, %c0_i32 : i32, i32, i32
  }
  func.func @transform_2(%arg0: i32, %arg1: i32) -> (i32, i32, i32, i32) {
    %c0_i32 = arith.constant 0 : i32
    %c0_i32_0 = arith.constant 0 : i32
    %c0_i32_1 = arith.constant 0 : i32
    %c0_i32_2 = arith.constant 0 : i32
    return %arg0, %c0_i32, %c0_i32_0, %c0_i32_1 : i32, i32, i32, i32
  }
}

</mosaic_0001>

<llo_original>
// kernel: tpu_custom_call.1
$region0: #{tpu_custom_call.1}
  #allocation0 [shape = 'u32[]', space=smem, size = 0x4, offset = 0x4, fixed_abs, tag = 'smem constant byte address 0x4 - core index']
  #allocation1 [shape = 'u32[144,128]{1,0:T(1,128)}', space=vmem, size = 0x12000, scoped, tag = 'internal scratch']
  %s0 = inlined_call_operand.hbm [shape: f32[2,8,128], index: 0, kind: input, shape index: {}]
  %s1 = inlined_call_operand.hbm [shape: f32[2,8,128], index: 1, kind: input, shape index: {}]
  %s2 = inlined_call_operand.hbm [shape: f32[2,4,8,128], index: 2, kind: output, shape index: {}]
  %s3 = sld [smem:[#allocation0]]
  $region53: #{tpu_custom_call.1} parent=0
    _
  %s5 = ssub.s32 1, %s3
  %s6 = scalar_select 0, %s5, %s3
  $region1: #{tpu_custom_call.1} parent=0
    #allocation2 [shape = 'u8[8192]{0}', space=vmem, size = 0x2000, scoped, tag = 'input window, operand 0']
    #allocation3 [shape = 's32[2]{0}', space=sflag, size = 0x8, scoped, tag = 'scoped memory for tpu_custom_call.1']
    #allocation4 [shape = 's32[2]{0}', space=sflag, size = 0x8, scoped, tag = 'scoped memory for tpu_custom_call.1']
    #allocation5 [shape = 'u8[8192]{0}', space=vmem, size = 0x2000, scoped, tag = 'input window, operand 1']
    #allocation6 [shape = 's32[2]{0}', space=sflag, size = 0x8, scoped, tag = 'scoped memory for tpu_custom_call.1']
    #allocation7 [shape = 'u8[32768]{0}', space=vmem, size = 0x8000, scoped, tag = 'output window, operand 0']
    %7 = vsyncpa [#allocation3], 0
    %s8 = scalar_lea.sflag [#allocation3], 1
    %9 = vsyncpa %s8, 0
    %10 = vsyncpa [#allocation6], 0
    %s11 = scalar_lea.sflag [#allocation6], 1
    %12 = vsyncpa %s11, 0
    %13 = vsyncpa [#allocation4], 0
    %s14 = scalar_lea.sflag [#allocation4], 1
    %15 = vsyncpa %s14, 0
    loop: start=0, step=1, limit=4
    $region2: #{tpu_custom_call.1} parent=1 // loop_pre_header
      _
    $region3: #{tpu_custom_call.1} parent=1 // loop_header
      %s17 = sphi 0, %s21
      %p18 = scmp.ge.s32.totalorder %s17, 4
      %s24 = sphi 0, %s36
      %s25 = sphi 0, %s32
      %s26 = sphi 0, %s24
      %s27 = sphi 0, %s25
      %s28 = sphi 0, %s26
      %s29 = sphi 0, %s27
      %s41 = sphi 0, %s43
      %s44 = sphi 0, %s41
      %s45 = sphi 0, %s44
      %s61 = sphi 0, %s45
      %s69 = sphi 0, %s71
      %s72 = sphi 0, %s69
      %s73 = sphi 0, %s72
      %s89 = sphi 0, %s73
      %s95 = sphi 0, %s97
      %s98 = sphi 0, %s95
      %s99 = sphi 0, %s98
      %s115 = sphi 0, %s99
    $region4: #{tpu_custom_call.1} parent=1 // loop_header_branch
      %20 = sbr.rel (%p18) target = $region8
    $region5: #{tpu_custom_call.1} parent=1 // loop_body
      %s22 = ssub.s32 %s17, 1
      %s23 = ssub.s32 %s17, 2
      %s30 = sadd.s32 1, %s25
      %p31 = scmp.ge.s32.totalorder %s30, 1
      %s32 = scalar_select %p31, 0, %s30
      %s33 = sadd.s32 1, %s24
      %s34 = scalar_select %p31, %s33, %s24
      %p35 = scmp.ge.s32.totalorder %s34, 2
      %s36 = scalar_select %p35, 0, %s34
      %s37 = ssub.s32 %s24, %s36
      %s38 = ssub.s32 %s25, %s32
      %s39 = sor.u32 %s37, %s38
      %p40 = scmp.eq.s32.totalorder %s39, 0
      %s42 = sadd.s32 %s41, 1
      %s43 = scalar_select %p40, %s41, %s42
      %p46 = pneg %p40
      %p47 = scmp.eq.s32.totalorder %s17, 1
      %p48 = por %p46, %p47
      %p49 = scmp.ne.s32.totalorder %s41, %s44
      %p50 = scmp.eq.s32.totalorder %s17, 0
      %p51 = por %p49, %p50
      %p52 = scmp.ne.s32.totalorder %s41, %s44
      %p53 = scmp.eq.s32.totalorder %s22, 1
      %p54 = por %p52, %p53
      %p55 = scmp.ne.s32.totalorder %s44, %s45
      %p56 = scmp.eq.s32.totalorder %s22, 0
      %p57 = por %p55, %p56
      %p58 = scmp.ne.s32.totalorder %s44, %s45
      %p59 = scmp.eq.s32.totalorder %s23, 1
      %p60 = por %p58, %p59
      %p62 = scmp.ne.s32.totalorder %s45, %s61
      %p63 = scmp.eq.s32.totalorder %s23, 0
      %p64 = por %p62, %p63
      %s65 = ssub.s32 %s24, %s36
      %s66 = ssub.s32 %s25, %s32
      %s67 = sor.u32 %s65, %s66
      %p68 = scmp.eq.s32.totalorder %s67, 0
      %s70 = sadd.s32 %s69, 1
      %s71 = scalar_select %p68, %s69, %s70
      %p74 = pneg %p68
      %p75 = scmp.eq.s32.totalorder %s17, 1
      %p76 = por %p74, %p75
      %p77 = scmp.ne.s32.totalorder %s69, %s72
      %p78 = scmp.eq.s32.totalorder %s17, 0
      %p79 = por %p77, %p78
      %p80 = scmp.ne.s32.totalorder %s69, %s72
      %p81 = scmp.eq.s32.totalorder %s22, 1
      %p82 = por %p80, %p81
      %p83 = scmp.ne.s32.totalorder %s72, %s73
      %p84 = scmp.eq.s32.totalorder %s22, 0
      %p85 = por %p83, %p84
      %p86 = scmp.ne.s32.totalorder %s72, %s73
      %p87 = scmp.eq.s32.totalorder %s23, 1
      %p88 = por %p86, %p87
      %p90 = scmp.ne.s32.totalorder %s73, %s89
      %p91 = scmp.eq.s32.totalorder %s23, 0
      %p92 = por %p90, %p91
      %s93 = ssub.s32 %s24, %s36
      %p94 = scmp.eq.s32.totalorder %s93, 0
      %s96 = sadd.s32 %s95, 1
      %s97 = scalar_select %p94, %s95, %s96
      %p100 = pneg %p94
      %p101 = scmp.eq.s32.totalorder %s17, 1
      %p102 = por %p100, %p101
      %p103 = scmp.ne.s32.totalorder %s95, %s98
      %p104 = scmp.eq.s32.totalorder %s17, 0
      %p105 = por %p103, %p104
      %p106 = scmp.ne.s32.totalorder %s95, %s98
      %p107 = scmp.eq.s32.totalorder %s22, 1
      %p108 = por %p106, %p107
      %p109 = scmp.ne.s32.totalorder %s98, %s99
      %p110 = scmp.eq.s32.totalorder %s22, 0
      %p111 = por %p109, %p110
      %p112 = scmp.ne.s32.totalorder %s98, %s99
      %p113 = scmp.eq.s32.totalorder %s23, 1
      %p114 = por %p112, %p113
      %p116 = scmp.ne.s32.totalorder %s99, %s115
      %p117 = scmp.eq.s32.totalorder %s23, 0
      %p118 = por %p116, %p117
      %p119 = scmp.le.s32.totalorder 1, %s17
      %p120 = scmp.lt.s32.totalorder %s17, 3
      %p121 = pnand %p119, %p120
      %p122 = pneg %p121
      // Predicated region
      $region9: #{tpu_custom_call.1} parent=5 // pred_check
        _
      $region10: #{tpu_custom_call.1} parent=5 // pred_check_branch
        %124 = sbr.rel (%p121) target = $region12
      $region11: #{tpu_custom_call.1} parent=5 // pred_region
        %s125 = ssub.s32 %s17, 1
      $region12: #{tpu_custom_call.1} parent=5 // pred_fallthru
        _
      %p126 = scmp.lt.s32.totalorder %s17, 2
      // Predicated region
      $region13: #{tpu_custom_call.1} parent=5 // pred_check
        %p127 = pneg %p126
      $region14: #{tpu_custom_call.1} parent=5 // pred_check_branch
        %129 = sbr.rel (%p127) target = $region16
      $region15: #{tpu_custom_call.1} parent=5 // pred_region
        // Predicated region
        $region17: #{tpu_custom_call.1} parent=15 // pred_check
          %p130 = pneg %p51
        $region18: #{tpu_custom_call.1} parent=15 // pred_check_branch
          %132 = sbr.rel (%p130) target = $region20
        $region19: #{tpu_custom_call.1} parent=15 // pred_region
          %s133 = sand.u32 %s41, 1
          %s134 = scalar_lea.sflag [#allocation3], %s133
          %s135 = sand.u32 %s41, 1
          %s136 = smul.addr %s135, 8
          %s137 = scalar_lea.vmem [#allocation2], %s136
          %s139 = ssub.s32 128, 128
          %140 = vsyncadd %s134, %s139
          %s141 = sadd.s32 %s25, %s24
          %s142 = smul.addr %s141, 128
          %s143 = scalar_lea.hbm %s0, %s142
          %s145 = sshll.u32 %s137, 4
          %s146 = int_to_ptr.vmem [resolvable:$true] %s145
          %148 = dma.hbm_to_vmem [thread:$0]  %s143, 128, %s146, %s134
        $region20: #{tpu_custom_call.1} parent=15 // pred_fallthru
          _
        // Predicated region
        $region21: #{tpu_custom_call.1} parent=15 // pred_check
          %p149 = pneg %p79
        $region22: #{tpu_custom_call.1} parent=15 // pred_check_branch
          %151 = sbr.rel (%p149) target = $region24
        $region23: #{tpu_custom_call.1} parent=15 // pred_region
          %s152 = sand.u32 %s69, 1
          %s153 = scalar_lea.sflag [#allocation6], %s152
          %s154 = sand.u32 %s69, 1
          %s155 = smul.addr %s154, 8
          %s156 = scalar_lea.vmem [#allocation5], %s155
          %s158 = ssub.s32 128, 128
          %159 = vsyncadd %s153, %s158
          %s160 = sadd.s32 %s25, %s24
          %s161 = smul.addr %s160, 128
          %s162 = scalar_lea.hbm %s1, %s161
          %s164 = sshll.u32 %s156, 4
          %s165 = int_to_ptr.vmem [resolvable:$true] %s164
          %167 = dma.hbm_to_vmem [thread:$0]  %s162, 128, %s165, %s153
        $region24: #{tpu_custom_call.1} parent=15 // pred_fallthru
          _
      $region16: #{tpu_custom_call.1} parent=5 // pred_fallthru
        _
      %p168 = scmp.le.s32.totalorder 1, %s17
      %p169 = scmp.lt.s32.totalorder %s17, 3
      %p170 = pnand %p168, %p169
      %p171 = pneg %p170
      // Predicated region
      $region25: #{tpu_custom_call.1} parent=5 // pred_check
        _
      $region26: #{tpu_custom_call.1} parent=5 // pred_check_branch
        %173 = sbr.rel (%p170) target = $region28
      $region27: #{tpu_custom_call.1} parent=5 // pred_region
        %s174 = ssub.s32 %s17, 1
        %s175 = sand.u32 %s44, 1
        %s176 = scalar_lea.sflag [#allocation3], %s175
        %s177 = sand.u32 %s44, 1
        %s178 = smul.addr %s177, 8
        %s179 = scalar_lea.vmem [#allocation2], %s178
        // Predicated region
        $region29: #{tpu_custom_call.1} parent=27 // pred_check
          %p180 = pneg %p57
        $region30: #{tpu_custom_call.1} parent=27 // pred_check_branch
          %182 = sbr.rel (%p180) target = $region32
        $region31: #{tpu_custom_call.1} parent=27 // pred_region
          %183 = dma.done %s176, 128
        $region32: #{tpu_custom_call.1} parent=27 // pred_fallthru
          _
        %s184 = sand.u32 %s72, 1
        %s185 = scalar_lea.sflag [#allocation6], %s184
        %s186 = sand.u32 %s72, 1
        %s187 = smul.addr %s186, 8
        %s188 = scalar_lea.vmem [#allocation5], %s187
        // Predicated region
        $region33: #{tpu_custom_call.1} parent=27 // pred_check
          %p189 = pneg %p85
        $region34: #{tpu_custom_call.1} parent=27 // pred_check_branch
          %191 = sbr.rel (%p189) target = $region36
        $region35: #{tpu_custom_call.1} parent=27 // pred_region
          %192 = dma.done %s185, 128
        $region36: #{tpu_custom_call.1} parent=27 // pred_fallthru
          _
        %s193 = sand.u32 %s44, 1
        %s194 = scalar_lea.sflag [#allocation3], %s193
        %s195 = sand.u32 %s44, 1
        %s196 = smul.addr %s195, 8
        %s197 = scalar_lea.vmem [#allocation2], %s196
        %p198 = pneg %p57
        %p199 = pneg %p54
        %s200 = sand.u32 %s72, 1
        %s201 = scalar_lea.sflag [#allocation6], %s200
        %s202 = sand.u32 %s72, 1
        %s203 = smul.addr %s202, 8
        %s204 = scalar_lea.vmem [#allocation5], %s203
        %p205 = pneg %p85
        %p206 = pneg %p82
        %p207 = pneg %p111
        %p208 = pneg %p108
        %s209 = sand.u32 %s98, 1
        %s210 = scalar_lea.sflag [#allocation4], %s209
        %s211 = sand.u32 %s98, 1
        %s212 = smul.addr %s211, 32
        %s213 = scalar_lea.vmem [#allocation7], %s212
        %p214 = scmp.eq.s32.totalorder %s27, 0
        // Predicated region
        $region37: #{tpu_custom_call.1} parent=27 // pred_check
          %p215 = pneg %p214
        $region38: #{tpu_custom_call.1} parent=27 // pred_check_branch
          %217 = sbr.rel (%p215) target = $region40
        $region39: #{tpu_custom_call.1} parent=27 // pred_region
          %218 = vst [vmem:[%s213] sm:$0xff] 0.0
          %219 = vst [vmem:[%s213 + $0x8] sm:$0xff] 0.0
          %220 = vst [vmem:[%s213 + $0x10] sm:$0xff] 0.0
          %221 = vst [vmem:[%s213 + $0x18] sm:$0xff] 0.0
        $region40: #{tpu_custom_call.1} parent=27 // pred_fallthru
          _
        %v222 = vld [vmem:[%s179] sm:$0xff]
        %v223 = vld [vmem:[%s188] sm:$0xff]
        %v224 = vand.u32 2147483647, %v222
        %v225 = vsub.f32 0.0, %v224
        %v226 = vmul.f32 %v225, 1.442695
        %v227 = vpow.pop %v226
        %v228 = vadd.f32 %v227, 1.0
        %v229 = vrcp.pop %v228
        %v230 = vmul.f32 1.0, %v229
        %vm231 = vcmp.ge.f32.partialorder %v222, 0.0
        %v232 = vsel %vm231, 1.0, %v227
        %v233 = vmul.f32 %v232, %v230
        %v234 = vadd.f32 %v227, 1.0
        %v235 = vlog2.pop %v234
        %v236 = vmul.f32 %v235, 0.6931472
        %v237 = vmul.f32 -0.5, %v227
        %v238 = vadd.f32 %v237, 1.0
        %v239 = vmul.f32 %v238, %v227
        %v240 = vand.u32 2147483647, %v227
        %vm241 = vcmp.lt.f32.partialorder %v240, 0.0004427343
        %v242 = vsel %vm241, %v239, %v236
        %v243 = vmax.f32 %v222, 0.0
        %v244 = vadd.f32 %v242, %v243
        %v245 = vmin.f32 %v244, 100.0
        %v246 = vsub.f32 0.0, %v222
        %v247 = vmax.f32 %v246, 0.0
        %v248 = vadd.f32 %v242, %v247
        %v249 = vmin.f32 %v248, 100.0
        %v250 = vmul.f32 %v223, %v249
        %v251 = vsub.f32 1.0, %v223
        %v252 = vmul.f32 %v251, %v245
        %v253 = vadd.f32 %v250, %v252
        %v254 = vld [vmem:[%s213] sm:$0xff]
        %v255 = vmul.f32 %v233, %v223
        %v256 = vadd.f32 %v255, 0.0
        %v257 = vadd.f32 %v254, %v256
        %258 = vst [vmem:[%s213] sm:$0xff] %v257
        %s259 = scalar_lea.vmem %s213, 8 [#allocation7]
        %v260 = vld [vmem:[%s259] sm:$0xff]
        %v261 = vadd.f32 %v233, 0.0
        %v262 = vadd.f32 %v260, %v261
        %263 = vst [vmem:[%s259] sm:$0xff] %v262
        %s264 = scalar_lea.vmem %s213, 16 [#allocation7]
        %v265 = vld [vmem:[%s264] sm:$0xff]
        %v266 = vadd.f32 %v223, 0.0
        %v267 = vadd.f32 %v265, %v266
        %268 = vst [vmem:[%s264] sm:$0xff] %v267
        %s269 = scalar_lea.vmem %s213, 24 [#allocation7]
        %v270 = vld [vmem:[%s269] sm:$0xff]
        %v271 = vadd.f32 %v253, 0.0
        %v272 = vadd.f32 %v270, %v271
        %273 = vst [vmem:[%s269] sm:$0xff] %v272
        %s274 = sand.u32 %s98, 1
        %s275 = scalar_lea.sflag [#allocation4], %s274
        %s276 = sand.u32 %s98, 1
        %s277 = smul.addr %s276, 32
        %s278 = scalar_lea.vmem [#allocation7], %s277
        // Predicated region
        $region41: #{tpu_custom_call.1} parent=27 // pred_check
          %p279 = pneg %p108
        $region42: #{tpu_custom_call.1} parent=27 // pred_check_branch
          %281 = sbr.rel (%p279) target = $region44
        $region43: #{tpu_custom_call.1} parent=27 // pred_region
          %s283 = ssub.s32 512, 512
          %284 = vsyncadd %s275, %s283
          %s285 = smul.addr %s26, 4
          %s286 = smul.addr %s285, 128
          %s287 = scalar_lea.hbm %s2, %s286
          %s288 = sshll.u32 %s278, 4
          %s289 = int_to_ptr.vmem [resolvable:$true] %s288
          %294 = dma.vmem_to_hbm [thread:$0]  %s289, 512, %s287, %s275, 128, 128, 8
        $region44: #{tpu_custom_call.1} parent=27 // pred_fallthru
          _
      $region28: #{tpu_custom_call.1} parent=5 // pred_fallthru
        _
      %p295 = scmp.le.s32.totalorder 2, %s17
      // Predicated region
      $region45: #{tpu_custom_call.1} parent=5 // pred_check
        %p296 = pneg %p295
      $region46: #{tpu_custom_call.1} parent=5 // pred_check_branch
        %298 = sbr.rel (%p296) target = $region48
      $region47: #{tpu_custom_call.1} parent=5 // pred_region
        %s299 = ssub.s32 %s17, 2
        // Predicated region
        $region49: #{tpu_custom_call.1} parent=47 // pred_check
          %p300 = pneg %p114
        $region50: #{tpu_custom_call.1} parent=47 // pred_check_branch
          %302 = sbr.rel (%p300) target = $region52
        $region51: #{tpu_custom_call.1} parent=47 // pred_region
          %s303 = sand.u32 %s99, 1
          %s304 = scalar_lea.sflag [#allocation4], %s303
          %s305 = sand.u32 %s99, 1
          %s306 = smul.addr %s305, 32
          %s307 = scalar_lea.vmem [#allocation7], %s306
          %308 = dma.done %s304, 512
        $region52: #{tpu_custom_call.1} parent=47 // pred_fallthru
          _
      $region48: #{tpu_custom_call.1} parent=5 // pred_fallthru
        _
    $region6: #{tpu_custom_call.1} parent=1 // loop_footer
      %s21 = sadd.s32 1, %s17
    $region7: #{tpu_custom_call.1} parent=1 // loop_footer_branch
      %16 = sbr.rel target = $region3
    $region8: #{tpu_custom_call.1} parent=1 // loop_exit
      _
    %309 = vsyncpa [#allocation3], 1
    %s310 = scalar_lea.sflag [#allocation3], 1
    %311 = vsyncpa %s310, 1
    %312 = vsyncpa [#allocation6], 1
    %s313 = scalar_lea.sflag [#allocation6], 1
    %314 = vsyncpa %s313, 1
    %315 = vsyncpa [#allocation4], 1
    %s316 = scalar_lea.sflag [#allocation4], 1
    %317 = vsyncpa %s316, 1

</llo_original>
